<compile_context>
chip_gen: v5e
topology: v5e:2x2
jax: 0.10.0
libtpu: 0.0.40
codegen_flags: <defaults>
</compile_context>

<pallas_src>
import jax
import jax.numpy as jnp
from jax import lax
from jax.experimental import pallas as pl
from jax.experimental.pallas import tpu as pltpu


def _decode_kernel(x_ref, w_ref, b_ref, o_ref):
    # x_ref: (TB, C)   activation tile
    # w_ref: (TD, C)   weight tile, PyTorch Linear layout (out_features, in_features)
    # b_ref: (1, TD)   bias tile
    # o_ref: (TB, TD)  output tile (lane-dense along TD)
    acc = lax.dot_general(
        x_ref[...], w_ref[...],
        dimension_numbers=(((1,), (1,)), ((), ())),   # contract over C, no transpose
        preferred_element_type=jnp.float32,
    )
    acc = acc + b_ref[...]
    o_ref[...] = jax.nn.sigmoid(acc).astype(o_ref.dtype)


def _round_up(n, m):
    return ((n + m - 1) // m) * m


def _choose_tiles(B, C, D):
    """Pick (TB, TD).

    Whole batch as a single tile when it is small (so weight AND x are each read exactly
    once); lane-dense D tiles as large as a v7x-safe VMEM budget allows, while keeping
    >= 2 tiles along D when there is enough work so both v7x TensorCores receive grid steps.
    """
    budget = 20 * 1024 * 1024          # double-buffered tile footprint cap (v7x VMEM = 64 MiB)
    c_lanes = max(128, _round_up(C, 128))

    TB = B if B <= 512 else 256        # 256 is a multiple of 8; ragged last tile is masked

    def footprint(td):
        # auto-pipeline double-buffers each operand; last dims pad to 128 lanes,
        # the bias row pads to 8 sublanes
        return 2 * 4 * (TB * c_lanes + td * c_lanes + TB * td + 8 * td)

    if D <= 128:
        return TB, D                   # single full-extent tile (always a legal block)

    d_cap = (D // 128) * 128           # never let a block exceed the array extent
    cands = [t for t in (2048, 1024, 512, 256, 128)
             if t <= d_cap and footprint(t) <= budget]
    if not cands:
        cands = [128]
    multi = [t for t in cands if pl.cdiv(D, t) >= 2]
    if multi and D > 256:
        return TB, multi[0]            # largest tile that still gives >= 2 D grid steps
    return TB, cands[0]


def ae_decode_li(x, weight, bias):
    """Pallas implementation of AE_decode_li.forward.

    x      : (B, class_num)           float32
    weight : (data_length, class_num) float32  (PyTorch Linear layout, NOT transposed)
    bias   : (data_length,)           float32
    returns: (B, data_length)         float32
    """
    B, C = x.shape
    D, C2 = weight.shape
    assert C == C2, "class_num mismatch"

    TB, TD = _choose_tiles(B, C, D)
    grid_d = pl.cdiv(D, TD)
    grid_b = pl.cdiv(B, TB)
    grid = (grid_d, grid_b)            # D outer, B inner -> each weight tile DMA'd once

    bias2d = bias.reshape(1, D)        # metadata-only reshape

    cost = pl.CostEstimate(
        flops=2 * B * C * D,
        transcendentals=B * D,
        # x re-read once per D tile (tiny), weight/output/bias single pass
        bytes_accessed=4 * (grid_d * B * C + D * C + B * D + D),
    )

    return pl.pallas_call(
        _decode_kernel,
        out_shape=jax.ShapeDtypeStruct((B, D), x.dtype),
        grid=grid,
        in_specs=[
            pl.BlockSpec((TB, C), lambda i, j: (j, 0)),    # x: batch tile (inner axis)
            pl.BlockSpec((TD, C), lambda i, j: (i, 0)),    # weight: D tile (outer axis)
            pl.BlockSpec((1, TD), lambda i, j: (0, i)),    # bias: D tile
        ],
        out_specs=pl.BlockSpec((TB, TD), lambda i, j: (j, i)),
        compiler_params=pltpu.CompilerParams(
            dimension_semantics=("parallel", "parallel"),  # no reduction axis; megacore-friendly
            vmem_limit_bytes=48 * 1024 * 1024,             # explicit headroom (safe on v7x 64 MiB)
        ),
        cost_estimate=cost,
    )(x, weight, bias2d)


def init_params(key, data_length, class_num):
    """Deterministic init matching nn.Linear's default (uniform +/- 1/sqrt(fan_in))."""
    kw, kb = jax.random.split(key)
    bound = 1.0 / jnp.sqrt(float(class_num))
    weight = jax.random.uniform(
        kw, (data_length, class_num), jnp.float32, minval=-bound, maxval=bound
    )
    bias = jax.random.uniform(
        kb, (data_length,), jnp.float32, minval=-bound, maxval=bound
    )
    return weight, bias


if __name__ == "__main__":
    key = jax.random.PRNGKey(0)
    k_in, k_param = jax.random.split(key)

    batch = 16
    class_num = 16       # latent / class dimension (Linear in_features)
    data_length = 1024   # decoded signal length (Linear out_features) -> D grid of 2 tiles

    x = jax.random.normal(k_in, (batch, class_num), dtype=jnp.float32)
    weight, bias = init_params(k_param, data_length, class_num)

    out = ae_decode_li(x, weight, bias)
    out = jax.block_until_ready(out)

    # reference check in plain JAX (same math as torch.sigmoid(fc_1(x)))
    ref = jax.nn.sigmoid(x @ weight.T + bias)
    assert out.shape == (batch, data_length)
    assert jnp.allclose(out, ref, atol=1e-5, rtol=1e-5)

    # also exercise a non-aligned shape to check the ragged-tile (masked store) path
    x2 = jax.random.normal(k_in, (5, class_num), dtype=jnp.float32)
    w2, b2 = init_params(k_param, 200, class_num)
    out2 = jax.block_until_ready(ae_decode_li(x2, w2, b2))
    ref2 = jax.nn.sigmoid(x2 @ w2.T + b2)
    assert out2.shape == (5, 200)
    assert jnp.allclose(out2, ref2, atol=1e-5, rtol=1e-5)

    print("KERNEL_OK")
</pallas_src>

<mosaic_0001>
module attributes {stable_mosaic.version = 11 : i64} {
  func.func @_decode_kernel(%arg0: i32, %arg1: i32, %arg2: memref<16x16xf32, #tpu.memory_space<vmem>>, %arg3: memref<512x16xf32, #tpu.memory_space<vmem>>, %arg4: memref<1x512xf32, #tpu.memory_space<vmem>>, %arg5: memref<16x512xf32, #tpu.memory_space<vmem>>) attributes {dimension_semantics = [#tpu.dimension_semantics<parallel>, #tpu.dimension_semantics<parallel>], iteration_bounds = array<i64: 2, 1>, scalar_prefetch = 0 : i64, scratch_operands = 0 : i64, tpu.core_type = #tpu.core_type<tc>, window_params = [{transform_indices = @transform_0, window_bounds = array<i64: 16, 16>}, {transform_indices = @transform_1, window_bounds = array<i64: 512, 16>}, {transform_indices = @transform_2, window_bounds = array<i64: 1, 512>}, {transform_indices = @transform_3, window_bounds = array<i64: 16, 512>}]} {
    %c0 = arith.constant 0 : index
    %c0_0 = arith.constant 0 : index
    %0 = vector.load %arg2[%c0, %c0_0] : memref<16x16xf32, #tpu.memory_space<vmem>>, vector<16x16xf32>
    %c0_1 = arith.constant 0 : index
    %c0_2 = arith.constant 0 : index
    %1 = vector.load %arg3[%c0_1, %c0_2] : memref<512x16xf32, #tpu.memory_space<vmem>>, vector<512x16xf32>
    %cst = arith.constant dense<0.000000e+00> : vector<16x512xf32>
    %2 = tpu.matmul %0, %1, %cst {dimension_numbers = #tpu.dot_dimension_numbers<[1], [1], [0], [0], [0, 0, 1, 0], [], []>} : vector<16x16xf32>, vector<512x16xf32>, vector<16x512xf32> -> vector<16x512xf32>
    %c0_3 = arith.constant 0 : index
    %c0_4 = arith.constant 0 : index
    %3 = vector.load %arg4[%c0_3, %c0_4] : memref<1x512xf32, #tpu.memory_space<vmem>>, vector<1x512xf32>
    %4 = vector.broadcast %3 : vector<1x512xf32> to vector<16x512xf32>
    %5 = arith.addf %2, %4 : vector<16x512xf32>
    %6 = arith.negf %5 : vector<16x512xf32>
    %7 = math.exp %6 : vector<16x512xf32>
    %cst_5 = arith.constant 1.000000e+00 : f32
    %8 = vector.broadcast %cst_5 : f32 to vector<16x512xf32>
    %9 = arith.addf %8, %7 : vector<16x512xf32>
    %10 = arith.divf %8, %9 : vector<16x512xf32>
    %c0_6 = arith.constant 0 : index
    %c0_7 = arith.constant 0 : index
    %11 = vector.load %arg5[%c0_6, %c0_7] : memref<16x512xf32, #tpu.memory_space<vmem>>, vector<16x512xf32>
    tpu.vector_store %arg5[%c0_6, %c0_7], %10 {strides = array<i32>} : memref<16x512xf32, #tpu.memory_space<vmem>>, vector<16x512xf32>,
    return
  }
  func.func @transform_0(%arg0: i32, %arg1: i32) -> (i32, i32) {
    %c0_i32 = arith.constant 0 : i32
    %c0_i32_0 = arith.constant 0 : i32
    return %arg1, %c0_i32 : i32, i32
  }
  func.func @transform_1(%arg0: i32, %arg1: i32) -> (i32, i32) {
    %c0_i32 = arith.constant 0 : i32
    %c0_i32_0 = arith.constant 0 : i32
    return %arg0, %c0_i32 : i32, i32
  }
  func.func @transform_2(%arg0: i32, %arg1: i32) -> (i32, i32) {
    %c0_i32 = arith.constant 0 : i32
    %c0_i32_0 = arith.constant 0 : i32
    return %c0_i32, %arg0 : i32, i32
  }
  func.func @transform_3(%arg0: i32, %arg1: i32) -> (i32, i32) {
    %c0_i32 = arith.constant 0 : i32
    return %arg1, %arg0 : i32, i32
  }
}

</mosaic_0001>

<llo_original>
// kernel: tpu_custom_call.1
$region0: #{tpu_custom_call.1}
  #allocation0 [shape = 'u32[]', space=smem, size = 0x4, offset = 0x4, fixed_abs, tag = 'smem constant byte address 0x4 - core index']
  #allocation1 [shape = 'u32[72,128]{1,0:T(1,128)}', space=vmem, size = 0x9000, scoped, tag = 'internal scratch']
  %s0 = inlined_call_operand.vmem [shape: f32[16,16], index: 0, kind: input, shape index: {}]
  %s1 = inlined_call_operand.vmem [shape: f32[1024,16], index: 1, kind: input, shape index: {}]
  %s2 = inlined_call_operand.vmem [shape: f32[1,1024], index: 2, kind: input, shape index: {}]
  %s3 = inlined_call_operand.hbm [shape: f32[16,1024], index: 3, kind: output, shape index: {}]
  %s4 = sld [smem:[#allocation0]]
  $region45: #{tpu_custom_call.1} parent=0
    _
  %s6 = ssub.s32 1, %s4
  %s7 = scalar_select 0, %s6, %s4
  $region1: #{tpu_custom_call.1} parent=0
    #allocation2 [shape = 'u8[65536]{0}', space=vmem, size = 0x10000, scoped, tag = 'output window, operand 0']
    #allocation3 [shape = 's32[2]{0}', space=sflag, size = 0x8, scoped, tag = 'scoped memory for tpu_custom_call.1']
    %8 = vsyncpa [#allocation3], 0
    %s9 = scalar_lea.sflag [#allocation3], 1
    %10 = vsyncpa %s9, 0
    loop: start=0, step=1, limit=4
    $region2: #{tpu_custom_call.1} parent=1 // loop_pre_header
      _
    $region3: #{tpu_custom_call.1} parent=1 // loop_header
      %s12 = sphi 0, %s16
      %p13 = scmp.ge.s32.totalorder %s12, 4
      %s19 = sphi 0, %s31
      %s20 = sphi 0, %s27
      %s21 = sphi 0, %s19
      %s22 = sphi 0, %s20
      %s23 = sphi 0, %s21
      %s24 = sphi 0, %s22
      %s34 = sphi 0, %s36
      %s37 = sphi 0, %s34
      %s38 = sphi 0, %s37
      %s54 = sphi 0, %s38
      %s60 = sphi 0, %s62
      %s63 = sphi 0, %s60
      %s64 = sphi 0, %s63
      %s80 = sphi 0, %s64
      %s86 = sphi 0, %s88
      %s89 = sphi 0, %s86
      %s90 = sphi 0, %s89
      %s106 = sphi 0, %s90
      %s114 = sphi 0, %s116
      %s117 = sphi 0, %s114
      %s118 = sphi 0, %s117
      %s134 = sphi 0, %s118
    $region4: #{tpu_custom_call.1} parent=1 // loop_header_branch
      %15 = sbr.rel (%p13) target = $region8
    $region5: #{tpu_custom_call.1} parent=1 // loop_body
      %s17 = ssub.s32 %s12, 1
      %s18 = ssub.s32 %s12, 2
      %s25 = sadd.s32 1, %s20
      %p26 = scmp.ge.s32.totalorder %s25, 1
      %s27 = scalar_select %p26, 0, %s25
      %s28 = sadd.s32 1, %s19
      %s29 = scalar_select %p26, %s28, %s19
      %p30 = scmp.ge.s32.totalorder %s29, 2
      %s31 = scalar_select %p30, 0, %s29
      %s32 = ssub.s32 %s20, %s27
      %p33 = scmp.eq.s32.totalorder %s32, 0
      %s35 = sadd.s32 %s34, 1
      %s36 = scalar_select %p33, %s34, %s35
      %p39 = pneg %p33
      %p40 = scmp.eq.s32.totalorder %s12, 1
      %p41 = por %p39, %p40
      %p42 = scmp.ne.s32.totalorder %s34, %s37
      %p43 = scmp.eq.s32.totalorder %s12, 0
      %p44 = por %p42, %p43
      %p45 = scmp.ne.s32.totalorder %s34, %s37
      %p46 = scmp.eq.s32.totalorder %s17, 1
      %p47 = por %p45, %p46
      %p48 = scmp.ne.s32.totalorder %s37, %s38
      %p49 = scmp.eq.s32.totalorder %s17, 0
      %p50 = por %p48, %p49
      %p51 = scmp.ne.s32.totalorder %s37, %s38
      %p52 = scmp.eq.s32.totalorder %s18, 1
      %p53 = por %p51, %p52
      %p55 = scmp.ne.s32.totalorder %s38, %s54
      %p56 = scmp.eq.s32.totalorder %s18, 0
      %p57 = por %p55, %p56
      %s58 = ssub.s32 %s19, %s31
      %p59 = scmp.eq.s32.totalorder %s58, 0
      %s61 = sadd.s32 %s60, 1
      %s62 = scalar_select %p59, %s60, %s61
      %p65 = pneg %p59
      %p66 = scmp.eq.s32.totalorder %s12, 1
      %p67 = por %p65, %p66
      %p68 = scmp.ne.s32.totalorder %s60, %s63
      %p69 = scmp.eq.s32.totalorder %s12, 0
      %p70 = por %p68, %p69
      %p71 = scmp.ne.s32.totalorder %s60, %s63
      %p72 = scmp.eq.s32.totalorder %s17, 1
      %p73 = por %p71, %p72
      %p74 = scmp.ne.s32.totalorder %s63, %s64
      %p75 = scmp.eq.s32.totalorder %s17, 0
      %p76 = por %p74, %p75
      %p77 = scmp.ne.s32.totalorder %s63, %s64
      %p78 = scmp.eq.s32.totalorder %s18, 1
      %p79 = por %p77, %p78
      %p81 = scmp.ne.s32.totalorder %s64, %s80
      %p82 = scmp.eq.s32.totalorder %s18, 0
      %p83 = por %p81, %p82
      %s84 = ssub.s32 %s19, %s31
      %p85 = scmp.eq.s32.totalorder %s84, 0
      %s87 = sadd.s32 %s86, 1
      %s88 = scalar_select %p85, %s86, %s87
      %p91 = pneg %p85
      %p92 = scmp.eq.s32.totalorder %s12, 1
      %p93 = por %p91, %p92
      %p94 = scmp.ne.s32.totalorder %s86, %s89
      %p95 = scmp.eq.s32.totalorder %s12, 0
      %p96 = por %p94, %p95
      %p97 = scmp.ne.s32.totalorder %s86, %s89
      %p98 = scmp.eq.s32.totalorder %s17, 1
      %p99 = por %p97, %p98
      %p100 = scmp.ne.s32.totalorder %s89, %s90
      %p101 = scmp.eq.s32.totalorder %s17, 0
      %p102 = por %p100, %p101
      %p103 = scmp.ne.s32.totalorder %s89, %s90
      %p104 = scmp.eq.s32.totalorder %s18, 1
      %p105 = por %p103, %p104
      %p107 = scmp.ne.s32.totalorder %s90, %s106
      %p108 = scmp.eq.s32.totalorder %s18, 0
      %p109 = por %p107, %p108
      %s110 = ssub.s32 %s20, %s27
      %s111 = ssub.s32 %s19, %s31
      %s112 = sor.u32 %s110, %s111
      %p113 = scmp.eq.s32.totalorder %s112, 0
      %s115 = sadd.s32 %s114, 1
      %s116 = scalar_select %p113, %s114, %s115
      %p119 = pneg %p113
      %p120 = scmp.eq.s32.totalorder %s12, 1
      %p121 = por %p119, %p120
      %p122 = scmp.ne.s32.totalorder %s114, %s117
      %p123 = scmp.eq.s32.totalorder %s12, 0
      %p124 = por %p122, %p123
      %p125 = scmp.ne.s32.totalorder %s114, %s117
      %p126 = scmp.eq.s32.totalorder %s17, 1
      %p127 = por %p125, %p126
      %p128 = scmp.ne.s32.totalorder %s117, %s118
      %p129 = scmp.eq.s32.totalorder %s17, 0
      %p130 = por %p128, %p129
      %p131 = scmp.ne.s32.totalorder %s117, %s118
      %p132 = scmp.eq.s32.totalorder %s18, 1
      %p133 = por %p131, %p132
      %p135 = scmp.ne.s32.totalorder %s118, %s134
      %p136 = scmp.eq.s32.totalorder %s18, 0
      %p137 = por %p135, %p136
      %p138 = scmp.le.s32.totalorder 1, %s12
      %p139 = scmp.lt.s32.totalorder %s12, 3
      %p140 = pnand %p138, %p139
      %p141 = pneg %p140
      // Predicated region
      $region9: #{tpu_custom_call.1} parent=5 // pred_check
        _
      $region10: #{tpu_custom_call.1} parent=5 // pred_check_branch
        %143 = sbr.rel (%p140) target = $region12
      $region11: #{tpu_custom_call.1} parent=5 // pred_region
        %s144 = ssub.s32 %s12, 1
        // Predicated region
        $region13: #{tpu_custom_call.1} parent=11 // pred_check
          %p145 = pneg %p50
        $region14: #{tpu_custom_call.1} parent=11 // pred_check_branch
          %147 = sbr.rel (%p145) target = $region16
        $region15: #{tpu_custom_call.1} parent=11 // pred_region
          %s148 = smul.u32 2, %s22
          %p149 = scmp.lt.s32.totalorder %s148, 1
          %s150 = scalar_select %p149, %s148, 1
          %s151 = smul.addr %s150, 8
          %s152 = scalar_lea.vmem %s0, %s151
          %s153 = smul.u32 2, %s22
        $region16: #{tpu_custom_call.1} parent=11 // pred_fallthru
          _
      $region12: #{tpu_custom_call.1} parent=5 // pred_fallthru
        _
      %p154 = scmp.lt.s32.totalorder %s12, 2
      // Predicated region
      $region17: #{tpu_custom_call.1} parent=5 // pred_check
        %p155 = pneg %p154
      $region18: #{tpu_custom_call.1} parent=5 // pred_check_branch
        %157 = sbr.rel (%p155) target = $region20
      $region19: #{tpu_custom_call.1} parent=5 // pred_region
        // Predicated region
        $region21: #{tpu_custom_call.1} parent=19 // pred_check
          %p158 = pneg %p70
        $region22: #{tpu_custom_call.1} parent=19 // pred_check_branch
          %160 = sbr.rel (%p158) target = $region24
        $region23: #{tpu_custom_call.1} parent=19 // pred_region
          %s161 = smul.u32 64, %s19
          %p162 = scmp.lt.s32.totalorder %s161, 127
          %s163 = scalar_select %p162, %s161, 127
          %s164 = smul.addr %s163, 8
          %s165 = scalar_lea.vmem %s1, %s164
          %s166 = smul.u32 64, %s19
        $region24: #{tpu_custom_call.1} parent=19 // pred_fallthru
          _
        // Predicated region
        $region25: #{tpu_custom_call.1} parent=19 // pred_check
          %p167 = pneg %p96
        $region26: #{tpu_custom_call.1} parent=19 // pred_check_branch
          %169 = sbr.rel (%p167) target = $region28
        $region27: #{tpu_custom_call.1} parent=19 // pred_region
          %s170 = smul.u32 4, %s19
          %p171 = scmp.lt.s32.totalorder %s170, 7
          %s172 = scalar_select %p171, %s170, 7
          %s173 = scalar_lea.vmem %s2, %s172
          %s174 = smul.u32 4, %s19
        $region28: #{tpu_custom_call.1} parent=19 // pred_fallthru
          _
      $region20: #{tpu_custom_call.1} parent=5 // pred_fallthru
        _
      %p175 = scmp.le.s32.totalorder 1, %s12
      %p176 = scmp.lt.s32.totalorder %s12, 3
      %p177 = pnand %p175, %p176
      %p178 = pneg %p177
      // Predicated region
      $region29: #{tpu_custom_call.1} parent=5 // pred_check
        _
      $region30: #{tpu_custom_call.1} parent=5 // pred_check_branch
        %180 = sbr.rel (%p177) target = $region32
      $region31: #{tpu_custom_call.1} parent=5 // pred_region
        %s181 = ssub.s32 %s12, 1
        %s182 = smul.u32 2, %s22
        %p183 = scmp.lt.s32.totalorder %s182, 1
        %s184 = scalar_select %p183, %s182, 1
        %s185 = smul.addr %s184, 8
        %s186 = scalar_lea.vmem %s0, %s185
        %p187 = pneg %p50
        %p188 = pneg %p47
        %s189 = smul.u32 64, %s21
        %p190 = scmp.lt.s32.totalorder %s189, 127
        %s191 = scalar_select %p190, %s189, 127
        %s192 = smul.addr %s191, 8
        %s193 = scalar_lea.vmem %s1, %s192
        %p194 = pneg %p76
        %p195 = pneg %p73
        %s196 = smul.u32 4, %s21
        %p197 = scmp.lt.s32.totalorder %s196, 7
        %s198 = scalar_select %p197, %s196, 7
        %s199 = scalar_lea.vmem %s2, %s198
        %p200 = pneg %p102
        %p201 = pneg %p99
        %p202 = pneg %p130
        %p203 = pneg %p127
        %s204 = sand.u32 %s117, 1
        %s205 = scalar_lea.sflag [#allocation3], %s204
        %s206 = sand.u32 %s117, 1
        %s207 = smul.addr %s206, 64
        %s208 = scalar_lea.vmem [#allocation2], %s207
        %s209 = smul.u32 2, %s22
        %p210 = scmp.lt.s32.totalorder %s209, 1
        %s211 = scalar_select %p210, %s209, 1
        %s212 = smul.addr %s211, 8
        %s213 = scalar_lea.vmem %s0, %s212
        %s214 = smul.u32 2, %s22
        %s215 = smul.u32 64, %s21
        %p216 = scmp.lt.s32.totalorder %s215, 127
        %s217 = scalar_select %p216, %s215, 127
        %s218 = smul.addr %s217, 8
        %s219 = scalar_lea.vmem %s1, %s218
        %s220 = smul.u32 64, %s21
        %s221 = smul.u32 4, %s21
        %p222 = scmp.lt.s32.totalorder %s221, 7
        %s223 = scalar_select %p222, %s221, 7
        %s224 = scalar_lea.vmem %s2, %s223
        %s225 = smul.u32 4, %s21
        %s226 = smul.u32 2, %s22
        %s227 = smul.u32 4, %s21
        %v228 = vld [vmem:[%s213] sm:$0xff]
        %v229 = vld [vmem:[%s213 + $0x8] sm:$0xff]
        %v230 = vld [vmem:[%s219] sm:$0xff]
        %v231 = vld [vmem:[%s219 + $0x8] sm:$0xff]
        %v232 = vld [vmem:[%s219 + $0x10] sm:$0xff]
        %v233 = vld [vmem:[%s219 + $0x18] sm:$0xff]
        %v234 = vld [vmem:[%s219 + $0x20] sm:$0xff]
        %v235 = vld [vmem:[%s219 + $0x28] sm:$0xff]
        %v236 = vld [vmem:[%s219 + $0x30] sm:$0xff]
        %v237 = vld [vmem:[%s219 + $0x38] sm:$0xff]
        %v238 = vld [vmem:[%s219 + $0x40] sm:$0xff]
        %v239 = vld [vmem:[%s219 + $0x48] sm:$0xff]
        %v240 = vld [vmem:[%s219 + $0x50] sm:$0xff]
        %v241 = vld [vmem:[%s219 + $0x58] sm:$0xff]
        %v242 = vld [vmem:[%s219 + $0x60] sm:$0xff]
        %v243 = vld [vmem:[%s219 + $0x68] sm:$0xff]
        %v244 = vld [vmem:[%s219 + $0x70] sm:$0xff]
        %v245 = vld [vmem:[%s219 + $0x78] sm:$0xff]
        %v246 = vld [vmem:[%s219 + $0x80] sm:$0xff]
        %v247 = vld [vmem:[%s219 + $0x88] sm:$0xff]
        %v248 = vld [vmem:[%s219 + $0x90] sm:$0xff]
        %v249 = vld [vmem:[%s219 + $0x98] sm:$0xff]
        %v250 = vld [vmem:[%s219 + $0xa0] sm:$0xff]
        %v251 = vld [vmem:[%s219 + $0xa8] sm:$0xff]
        %v252 = vld [vmem:[%s219 + $0xb0] sm:$0xff]
        %v253 = vld [vmem:[%s219 + $0xb8] sm:$0xff]
        %v254 = vld [vmem:[%s219 + $0xc0] sm:$0xff]
        %v255 = vld [vmem:[%s219 + $0xc8] sm:$0xff]
        %v256 = vld [vmem:[%s219 + $0xd0] sm:$0xff]
        %v257 = vld [vmem:[%s219 + $0xd8] sm:$0xff]
        %v258 = vld [vmem:[%s219 + $0xe0] sm:$0xff]
        %v259 = vld [vmem:[%s219 + $0xe8] sm:$0xff]
        %v260 = vld [vmem:[%s219 + $0xf0] sm:$0xff]
        %v261 = vld [vmem:[%s219 + $0xf8] sm:$0xff]
        %v262 = vld [vmem:[%s219 + $0x100] sm:$0xff]
        %v263 = vld [vmem:[%s219 + $0x108] sm:$0xff]
        %v264 = vld [vmem:[%s219 + $0x110] sm:$0xff]
        %v265 = vld [vmem:[%s219 + $0x118] sm:$0xff]
        %v266 = vld [vmem:[%s219 + $0x120] sm:$0xff]
        %v267 = vld [vmem:[%s219 + $0x128] sm:$0xff]
        %v268 = vld [vmem:[%s219 + $0x130] sm:$0xff]
        %v269 = vld [vmem:[%s219 + $0x138] sm:$0xff]
        %v270 = vld [vmem:[%s219 + $0x140] sm:$0xff]
        %v271 = vld [vmem:[%s219 + $0x148] sm:$0xff]
        %v272 = vld [vmem:[%s219 + $0x150] sm:$0xff]
        %v273 = vld [vmem:[%s219 + $0x158] sm:$0xff]
        %v274 = vld [vmem:[%s219 + $0x160] sm:$0xff]
        %v275 = vld [vmem:[%s219 + $0x168] sm:$0xff]
        %v276 = vld [vmem:[%s219 + $0x170] sm:$0xff]
        %v277 = vld [vmem:[%s219 + $0x178] sm:$0xff]
        %v278 = vld [vmem:[%s219 + $0x180] sm:$0xff]
        %v279 = vld [vmem:[%s219 + $0x188] sm:$0xff]
        %v280 = vld [vmem:[%s219 + $0x190] sm:$0xff]
        %v281 = vld [vmem:[%s219 + $0x198] sm:$0xff]
        %v282 = vld [vmem:[%s219 + $0x1a0] sm:$0xff]
        %v283 = vld [vmem:[%s219 + $0x1a8] sm:$0xff]
        %v284 = vld [vmem:[%s219 + $0x1b0] sm:$0xff]
        %v285 = vld [vmem:[%s219 + $0x1b8] sm:$0xff]
        %v286 = vld [vmem:[%s219 + $0x1c0] sm:$0xff]
        %v287 = vld [vmem:[%s219 + $0x1c8] sm:$0xff]
        %v288 = vld [vmem:[%s219 + $0x1d0] sm:$0xff]
        %v289 = vld [vmem:[%s219 + $0x1d8] sm:$0xff]
        %v290 = vld [vmem:[%s219 + $0x1e0] sm:$0xff]
        %v291 = vld [vmem:[%s219 + $0x1e8] sm:$0xff]
        %v292 = vld [vmem:[%s219 + $0x1f0] sm:$0xff]
        %v293 = vld [vmem:[%s219 + $0x1f8] sm:$0xff]
        %v294 = vld [vmem:[%s224] sm:$0xf]
        %v296 = vperm.slane %v294, 0
        %v297 = vperm.slane %v294, 1
        %v298 = vperm.slane %v294, 2
        %v299 = vperm.slane %v294, 3
        %vm304 = vcmask 130048
        %v306 = vsel %vm304, %v228, 0
        %v309 = vsel %vm304, %v229, 0
        %v312 = vsel %vm304, %v230, 0
        %v315 = vsel %vm304, %v231, 0
        %v318 = vsel %vm304, %v232, 0
        %v321 = vsel %vm304, %v233, 0
        %v324 = vsel %vm304, %v234, 0
        %v327 = vsel %vm304, %v235, 0
        %v330 = vsel %vm304, %v236, 0
        %v333 = vsel %vm304, %v237, 0
        %v336 = vsel %vm304, %v238, 0
        %v339 = vsel %vm304, %v239, 0
        %v342 = vsel %vm304, %v240, 0
        %v345 = vsel %vm304, %v241, 0
        %v348 = vsel %vm304, %v242, 0
        %v351 = vsel %vm304, %v243, 0
        %v354 = vsel %vm304, %v244, 0
        %v357 = vsel %vm304, %v245, 0
        %v360 = vsel %vm304, %v246, 0
        %v363 = vsel %vm304, %v247, 0
        %v366 = vsel %vm304, %v248, 0
        %v369 = vsel %vm304, %v249, 0
        %v372 = vsel %vm304, %v250, 0
        %v375 = vsel %vm304, %v251, 0
        %v378 = vsel %vm304, %v252, 0
        %v381 = vsel %vm304, %v253, 0
        %v384 = vsel %vm304, %v254, 0
        %v387 = vsel %vm304, %v255, 0
        %v390 = vsel %vm304, %v256, 0
        %v393 = vsel %vm304, %v257, 0
        %v396 = vsel %vm304, %v258, 0
        %v399 = vsel %vm304, %v259, 0
        %v402 = vsel %vm304, %v260, 0
        %v405 = vsel %vm304, %v261, 0
        %v408 = vsel %vm304, %v262, 0
        %v411 = vsel %vm304, %v263, 0
        %v414 = vsel %vm304, %v264, 0
        %v417 = vsel %vm304, %v265, 0
        %v420 = vsel %vm304, %v266, 0
        %v423 = vsel %vm304, %v267, 0
        %v426 = vsel %vm304, %v268, 0
        %v429 = vsel %vm304, %v269, 0
        %v432 = vsel %vm304, %v270, 0
        %v435 = vsel %vm304, %v271, 0
        %v438 = vsel %vm304, %v272, 0
        %v441 = vsel %vm304, %v273, 0
        %v444 = vsel %vm304, %v274, 0
        %v447 = vsel %vm304, %v275, 0
        %v450 = vsel %vm304, %v276, 0
        %v453 = vsel %vm304, %v277, 0
        %v456 = vsel %vm304, %v278, 0
        %v459 = vsel %vm304, %v279, 0
        %v462 = vsel %vm304, %v280, 0
        %v465 = vsel %vm304, %v281, 0
        %v468 = vsel %vm304, %v282, 0
        %v471 = vsel %vm304, %v283, 0
        %v474 = vsel %vm304, %v284, 0
        %v477 = vsel %vm304, %v285, 0
        %v480 = vsel %vm304, %v286, 0
        %v483 = vsel %vm304, %v287, 0
        %v486 = vsel %vm304, %v288, 0
        %v489 = vsel %vm304, %v289, 0
        %v492 = vsel %vm304, %v290, 0
        %v495 = vsel %vm304, %v291, 0
        %v498 = vsel %vm304, %v292, 0
        %v501 = vsel %vm304, %v293, 0
        %503 = vmatpush.xpose.msra.mxu0 %v357
        %504 = vmatpush.xpose.msra.mxu0 %v354
        %505 = vmatpush.xpose.msra.mxu0 %v351
        %506 = vmatpush.xpose.msra.mxu0 %v348
        %507 = vmatpush.xpose.msra.mxu0 %v345
        %508 = vmatpush.xpose.msra.mxu0 %v342
        %509 = vmatpush.xpose.msra.mxu0 %v339
        %510 = vmatpush.xpose.msra.mxu0 %v336
        %511 = vmatpush.xpose.msra.mxu0 %v333
        %512 = vmatpush.xpose.msra.mxu0 %v330
        %513 = vmatpush.xpose.msra.mxu0 %v327
        %514 = vmatpush.xpose.msra.mxu0 %v324
        %515 = vmatpush.xpose.msra.mxu0 %v321
        %516 = vmatpush.xpose.msra.mxu0 %v318
        %517 = vmatpush.xpose.msra.mxu0 %v315
        %518 = vmatpush.xpose.msra.mxu0 %v312
        %519 = vmatmul.f32.gmra.mxu0 %v306
        %v520 = vpop.f32.mrf.mxu0
        %v521 = vadd.f32 %v296, %v520
        %522 = vmatmul.f32.gmra.mxu0 %v309
        %v523 = vpop.f32.mrf.mxu0
        %v524 = vadd.f32 %v296, %v523
        %525 = vdwg.mxu0
        %526 = vmatpush.xpose.msra.mxu0 %v405
        %527 = vmatpush.xpose.msra.mxu0 %v402
        %528 = vmatpush.xpose.msra.mxu0 %v399
        %529 = vmatpush.xpose.msra.mxu0 %v396
        %530 = vmatpush.xpose.msra.mxu0 %v393
        %531 = vmatpush.xpose.msra.mxu0 %v390
        %532 = vmatpush.xpose.msra.mxu0 %v387
        %533 = vmatpush.xpose.msra.mxu0 %v384
        %534 = vmatpush.xpose.msra.mxu0 %v381
        %535 = vmatpush.xpose.msra.mxu0 %v378
        %536 = vmatpush.xpose.msra.mxu0 %v375
        %537 = vmatpush.xpose.msra.mxu0 %v372
        %538 = vmatpush.xpose.msra.mxu0 %v369
        %539 = vmatpush.xpose.msra.mxu0 %v366
        %540 = vmatpush.xpose.msra.mxu0 %v363
        %541 = vmatpush.xpose.msra.mxu0 %v360
        %542 = vmatmul.f32.gmra.mxu0 %v306
        %v543 = vpop.f32.mrf.mxu0
        %v544 = vadd.f32 %v297, %v543
        %545 = vmatmul.f32.gmra.mxu0 %v309
        %v546 = vpop.f32.mrf.mxu0
        %v547 = vadd.f32 %v297, %v546
        %548 = vdwg.mxu0
        %549 = vmatpush.xpose.msra.mxu0 %v453
        %550 = vmatpush.xpose.msra.mxu0 %v450
        %551 = vmatpush.xpose.msra.mxu0 %v447
        %552 = vmatpush.xpose.msra.mxu0 %v444
        %553 = vmatpush.xpose.msra.mxu0 %v441
        %554 = vmatpush.xpose.msra.mxu0 %v438
        %555 = vmatpush.xpose.msra.mxu0 %v435
        %556 = vmatpush.xpose.msra.mxu0 %v432
        %557 = vmatpush.xpose.msra.mxu0 %v429
        %558 = vmatpush.xpose.msra.mxu0 %v426
        %559 = vmatpush.xpose.msra.mxu0 %v423
        %560 = vmatpush.xpose.msra.mxu0 %v420
        %561 = vmatpush.xpose.msra.mxu0 %v417
        %562 = vmatpush.xpose.msra.mxu0 %v414
        %563 = vmatpush.xpose.msra.mxu0 %v411
        %564 = vmatpush.xpose.msra.mxu0 %v408
        %565 = vmatmul.f32.gmra.mxu0 %v306
        %v566 = vpop.f32.mrf.mxu0
        %v567 = vadd.f32 %v298, %v566
        %568 = vmatmul.f32.gmra.mxu0 %v309
        %v569 = vpop.f32.mrf.mxu0
        %v570 = vadd.f32 %v298, %v569
        %571 = vdwg.mxu0
        %572 = vmatpush.xpose.msra.mxu0 %v501
        %573 = vmatpush.xpose.msra.mxu0 %v498
        %574 = vmatpush.xpose.msra.mxu0 %v495
        %575 = vmatpush.xpose.msra.mxu0 %v492
        %576 = vmatpush.xpose.msra.mxu0 %v489
        %577 = vmatpush.xpose.msra.mxu0 %v486
        %578 = vmatpush.xpose.msra.mxu0 %v483
        %579 = vmatpush.xpose.msra.mxu0 %v480
        %580 = vmatpush.xpose.msra.mxu0 %v477
        %581 = vmatpush.xpose.msra.mxu0 %v474
        %582 = vmatpush.xpose.msra.mxu0 %v471
        %583 = vmatpush.xpose.msra.mxu0 %v468
        %584 = vmatpush.xpose.msra.mxu0 %v465
        %585 = vmatpush.xpose.msra.mxu0 %v462
        %586 = vmatpush.xpose.msra.mxu0 %v459
        %587 = vmatpush.xpose.msra.mxu0 %v456
        %588 = vmatmul.f32.gmra.mxu0 %v306
        %v589 = vpop.f32.mrf.mxu0
        %v590 = vadd.f32 %v299, %v589
        %591 = vmatmul.f32.gmra.mxu0 %v309
        %v592 = vpop.f32.mrf.mxu0
        %v593 = vadd.f32 %v299, %v592
        %594 = vdwg.mxu0
        %v595 = vxor.u32 %v521, 2147483648
        %v596 = vxor.u32 %v544, 2147483648
        %v597 = vxor.u32 %v567, 2147483648
        %v598 = vxor.u32 %v590, 2147483648
        %v599 = vxor.u32 %v524, 2147483648
        %v600 = vxor.u32 %v547, 2147483648
        %v601 = vxor.u32 %v570, 2147483648
        %v602 = vxor.u32 %v593, 2147483648
        %v603 = vmul.f32 %v595, 1.442695
        %v604 = vpow.pop %v603
        %v605 = vmul.f32 %v596, 1.442695
        %v606 = vpow.pop %v605
        %v607 = vmul.f32 %v597, 1.442695
        %v608 = vpow.pop %v607
        %v609 = vmul.f32 %v598, 1.442695
        %v610 = vpow.pop %v609
        %v611 = vmul.f32 %v599, 1.442695
        %v612 = vpow.pop %v611
        %v613 = vmul.f32 %v600, 1.442695
        %v614 = vpow.pop %v613
        %v615 = vmul.f32 %v601, 1.442695
        %v616 = vpow.pop %v615
        %v617 = vmul.f32 %v602, 1.442695
        %v618 = vpow.pop %v617
        %v619 = vadd.f32 %v604, 1.0
        %v620 = vadd.f32 %v606, 1.0
        %v621 = vadd.f32 %v608, 1.0
        %v622 = vadd.f32 %v610, 1.0
        %v623 = vadd.f32 %v612, 1.0
        %v624 = vadd.f32 %v614, 1.0
        %v625 = vadd.f32 %v616, 1.0
        %v626 = vadd.f32 %v618, 1.0
        %v627 = vrcp.pop %v619
        %v628 = vmul.f32 %v619, %v627
        %v629 = vsub.f32 1.0, %v628
        %v630 = vmul.f32 %v627, %v629
        %v631 = vadd.f32 %v627, %v630
        %vm632 = vweird.f32 %v619
        %vm633 = vweird.f32 %v627
        %vm634 = vmor %vm632, %vm633
        %v635 = vsel %vm634, %v627, %v631
        %v636 = vand.u32 2147483647, %v619
        %vm637 = vcmp.eq.f32.partialorder %v636, 8.507059e+37
        %v638 = vand.u32 %v619, 2147483648
        %v639 = vor.u32 1.1754944e-38, %v638
        %v640 = vsel %vm637, %v639, %v635
        %v641 = vmul.f32 1.0, %v640
        %v642 = vrcp.pop %v620
        %v643 = vmul.f32 %v620, %v642
        %v644 = vsub.f32 1.0, %v643
        %v645 = vmul.f32 %v642, %v644
        %v646 = vadd.f32 %v642, %v645
        %vm647 = vweird.f32 %v620
        %vm648 = vweird.f32 %v642
        %vm649 = vmor %vm647, %vm648
        %v650 = vsel %vm649, %v642, %v646
        %v651 = vand.u32 2147483647, %v620
        %vm652 = vcmp.eq.f32.partialorder %v651, 8.507059e+37
        %v653 = vand.u32 %v620, 2147483648
        %v654 = vor.u32 1.1754944e-38, %v653
        %v655 = vsel %vm652, %v654, %v650
        %v656 = vmul.f32 1.0, %v655
        %v657 = vrcp.pop %v621
        %v658 = vmul.f32 %v621, %v657
        %v659 = vsub.f32 1.0, %v658
        %v660 = vmul.f32 %v657, %v659
        %v661 = vadd.f32 %v657, %v660
        %vm662 = vweird.f32 %v621
        %vm663 = vweird.f32 %v657
        %vm664 = vmor %vm662, %vm663
        %v665 = vsel %vm664, %v657, %v661
        %v666 = vand.u32 2147483647, %v621
        %vm667 = vcmp.eq.f32.partialorder %v666, 8.507059e+37
        %v668 = vand.u32 %v621, 2147483648
        %v669 = vor.u32 1.1754944e-38, %v668
        %v670 = vsel %vm667, %v669, %v665
        %v671 = vmul.f32 1.0, %v670
        %v672 = vrcp.pop %v622
        %v673 = vmul.f32 %v622, %v672
        %v674 = vsub.f32 1.0, %v673
        %v675 = vmul.f32 %v672, %v674
        %v676 = vadd.f32 %v672, %v675
        %vm677 = vweird.f32 %v622
        %vm678 = vweird.f32 %v672
        %vm679 = vmor %vm677, %vm678
        %v680 = vsel %vm679, %v672, %v676
        %v681 = vand.u32 2147483647, %v622
        %vm682 = vcmp.eq.f32.partialorder %v681, 8.507059e+37
        %v683 = vand.u32 %v622, 2147483648
        %v684 = vor.u32 1.1754944e-38, %v683
        %v685 = vsel %vm682, %v684, %v680
        %v686 = vmul.f32 1.0, %v685
        %v687 = vrcp.pop %v623
        %v688 = vmul.f32 %v623, %v687
        %v689 = vsub.f32 1.0, %v688
        %v690 = vmul.f32 %v687, %v689
        %v691 = vadd.f32 %v687, %v690
        %vm692 = vweird.f32 %v623
        %vm693 = vweird.f32 %v687
        %vm694 = vmor %vm692, %vm693
        %v695 = vsel %vm694, %v687, %v691
        %v696 = vand.u32 2147483647, %v623
        %vm697 = vcmp.eq.f32.partialorder %v696, 8.507059e+37
        %v698 = vand.u32 %v623, 2147483648
        %v699 = vor.u32 1.1754944e-38, %v698
        %v700 = vsel %vm697, %v699, %v695
        %v701 = vmul.f32 1.0, %v700
        %v702 = vrcp.pop %v624
        %v703 = vmul.f32 %v624, %v702
        %v704 = vsub.f32 1.0, %v703
        %v705 = vmul.f32 %v702, %v704
        %v706 = vadd.f32 %v702, %v705
        %vm707 = vweird.f32 %v624
        %vm708 = vweird.f32 %v702
        %vm709 = vmor %vm707, %vm708
        %v710 = vsel %vm709, %v702, %v706
        %v711 = vand.u32 2147483647, %v624
        %vm712 = vcmp.eq.f32.partialorder %v711, 8.507059e+37
        %v713 = vand.u32 %v624, 2147483648
        %v714 = vor.u32 1.1754944e-38, %v713
        %v715 = vsel %vm712, %v714, %v710
        %v716 = vmul.f32 1.0, %v715
        %v717 = vrcp.pop %v625
        %v718 = vmul.f32 %v625, %v717
        %v719 = vsub.f32 1.0, %v718
        %v720 = vmul.f32 %v717, %v719
        %v721 = vadd.f32 %v717, %v720
        %vm722 = vweird.f32 %v625
        %vm723 = vweird.f32 %v717
        %vm724 = vmor %vm722, %vm723
        %v725 = vsel %vm724, %v717, %v721
        %v726 = vand.u32 2147483647, %v625
        %vm727 = vcmp.eq.f32.partialorder %v726, 8.507059e+37
        %v728 = vand.u32 %v625, 2147483648
        %v729 = vor.u32 1.1754944e-38, %v728
        %v730 = vsel %vm727, %v729, %v725
        %v731 = vmul.f32 1.0, %v730
        %v732 = vrcp.pop %v626
        %v733 = vmul.f32 %v626, %v732
        %v734 = vsub.f32 1.0, %v733
        %v735 = vmul.f32 %v732, %v734
        %v736 = vadd.f32 %v732, %v735
        %vm737 = vweird.f32 %v626
        %vm738 = vweird.f32 %v732
        %vm739 = vmor %vm737, %vm738
        %v740 = vsel %vm739, %v732, %v736
        %v741 = vand.u32 2147483647, %v626
        %vm742 = vcmp.eq.f32.partialorder %v741, 8.507059e+37
        %v743 = vand.u32 %v626, 2147483648
        %v744 = vor.u32 1.1754944e-38, %v743
        %v745 = vsel %vm742, %v744, %v740
        %v746 = vmul.f32 1.0, %v745
        %747 = vst [vmem:[%s208] sm:$0xff] %v641
        %748 = vst [vmem:[%s208 + $0x8] sm:$0xff] %v656
        %749 = vst [vmem:[%s208 + $0x10] sm:$0xff] %v671
        %750 = vst [vmem:[%s208 + $0x18] sm:$0xff] %v686
        %751 = vst [vmem:[%s208 + $0x20] sm:$0xff] %v701
        %752 = vst [vmem:[%s208 + $0x28] sm:$0xff] %v716
        %753 = vst [vmem:[%s208 + $0x30] sm:$0xff] %v731
        %754 = vst [vmem:[%s208 + $0x38] sm:$0xff] %v746
        %s755 = sand.u32 %s117, 1
        %s756 = scalar_lea.sflag [#allocation3], %s755
        %s757 = sand.u32 %s117, 1
        %s758 = smul.addr %s757, 64
        %s759 = scalar_lea.vmem [#allocation2], %s758
        // Predicated region
        $region33: #{tpu_custom_call.1} parent=31 // pred_check
          %p760 = pneg %p127
        $region34: #{tpu_custom_call.1} parent=31 // pred_check_branch
          %762 = sbr.rel (%p760) target = $region36
        $region35: #{tpu_custom_call.1} parent=31 // pred_region
          %s763 = smul.u32 2, %s22
          %s764 = smul.u32 4, %s21
          %766 = vsyncadd %s756, 0
          %s767 = smul.addr %s763, 8
          %s768 = sadd.s32 %s764, %s767
          %s769 = smul.addr %s768, 8
          %s770 = scalar_lea.hbm %s3, %s769
          %s771 = sshll.u32 %s759, 4
          %s772 = int_to_ptr.vmem [resolvable:$true] %s771
          %s773 = sshll.u32 %s770, 4
          %s774 = int_to_ptr.hbm [resolvable:$true] %s773
          %779 = dma.vmem_to_hbm [thread:$0]  %s772, 1024, %s774, %s756, 512, 1024, 32
        $region36: #{tpu_custom_call.1} parent=31 // pred_fallthru
          _
      $region32: #{tpu_custom_call.1} parent=5 // pred_fallthru
        _
      %p780 = scmp.le.s32.totalorder 2, %s12
      // Predicated region
      $region37: #{tpu_custom_call.1} parent=5 // pred_check
        %p781 = pneg %p780
      $region38: #{tpu_custom_call.1} parent=5 // pred_check_branch
        %783 = sbr.rel (%p781) target = $region40
      $region39: #{tpu_custom_call.1} parent=5 // pred_region
        %s784 = ssub.s32 %s12, 2
        // Predicated region
        $region41: #{tpu_custom_call.1} parent=39 // pred_check
          %p785 = pneg %p133
        $region42: #{tpu_custom_call.1} parent=39 // pred_check_branch
          %787 = sbr.rel (%p785) target = $region44
        $region43: #{tpu_custom_call.1} parent=39 // pred_region
          %s788 = sand.u32 %s118, 1
          %s789 = scalar_lea.sflag [#allocation3], %s788
          %s790 = sand.u32 %s118, 1
          %s791 = smul.addr %s790, 64
          %s792 = scalar_lea.vmem [#allocation2], %s791
          %794 = dma.done %s789, 1024
        $region44: #{tpu_custom_call.1} parent=39 // pred_fallthru
          _
      $region40: #{tpu_custom_call.1} parent=5 // pred_fallthru
        _
    $region6: #{tpu_custom_call.1} parent=1 // loop_footer
      %s16 = sadd.s32 1, %s12
    $region7: #{tpu_custom_call.1} parent=1 // loop_footer_branch
      %11 = sbr.rel target = $region3
    $region8: #{tpu_custom_call.1} parent=1 // loop_exit
      _
    %795 = vsyncpa [#allocation3], 1
    %s796 = scalar_lea.sflag [#allocation3], 1
    %797 = vsyncpa %s796, 1

</llo_original>
